<compile_context>
chip_gen: v5e
topology: v5e:2x2
jax: 0.10.0
libtpu: 0.0.40
codegen_flags: <defaults>
</compile_context>

<pallas_src>
import functools
import math

import jax
import jax.numpy as jnp
from jax import lax
from jax.experimental import pallas as pl
from jax.experimental.pallas import tpu as pltpu

_NORM_EPS = 1e-12   # F.normalize default eps
_BN_EPS = 1e-5      # nn.BatchNorm1d default eps


def _mhcc_kernel(x_ref, w_ref, b_ref, wn_ref, out_ref, acc_ref, *,
                 inv_hw, inv_temp):
    hw_i = pl.program_id(1)
    ht = x_ref.shape[-1]
    n_chunks = ht // 128

    @pl.when(hw_i == 0)
    def _init():
        acc_ref[...] = jnp.zeros_like(acc_ref)

    # Lane-dense VPU accumulation: add each 128-lane chunk of the x tile into
    # the (bt, C, 128) f32 accumulator.  No cross-lane (XLU) reduce and no
    # masked stores in the hot loop; bf16 inputs upcast one chunk at a time.
    for j in range(n_chunks):
        acc_ref[...] += x_ref[:, :, j * 128:(j + 1) * 128].astype(jnp.float32)

    @pl.when(hw_i == pl.num_programs(1) - 1)
    def _finish():
        # One XLU reduce per batch tile -> GAP pooled features (bt, C).
        pooled = jnp.sum(acc_ref[...], axis=-1) * inv_hw
        # Linear with the BatchNorm1d eval-affine already folded in.
        h = jnp.dot(pooled, w_ref[...],
                    preferred_element_type=jnp.float32) + b_ref[...]
        # F.normalize(h, dim=1): h / max(||h||, eps) == h * rsqrt(max(h.h, eps^2)).
        sumsq = jnp.sum(h * h, axis=-1, keepdims=True)
        hn = h * lax.rsqrt(jnp.maximum(sumsq, _NORM_EPS * _NORM_EPS))
        # Cosine logits vs. pre-normalized, concatenated, lane-dense centers.
        logits = jnp.dot(hn, wn_ref[...], preferred_element_type=jnp.float32)
        out_ref[...] = logits * inv_temp


def _round_up(v, m):
    return ((v + m - 1) // m) * m


def _vmem_capacity_bytes():
    try:
        return int(pltpu.get_tpu_info().vmem_capacity_bytes)
    except Exception:
        return 64 << 20   # conservative fallback (v7x per-core VMEM)


def _pick_tiles(B, C, HW_pad, x_itemsize, dim_pad, n_pad, vmem_cap):
    """Generation-aware (batch_tile, hw_tile, footprint_bytes) selection."""
    budget = vmem_cap // 2                                   # total footprint budget
    x_tile_cap = (3 << 20) if vmem_cap <= (64 << 20) else (16 << 20)
    weight_bytes = (C * dim_pad + dim_pad + dim_pad * n_pad) * 4

    def footprint(bt, ht):
        x_tile = bt * C * ht * x_itemsize
        out_blk = bt * n_pad * 4
        acc = bt * C * 128 * 4
        # 2x for double-buffered inputs/outputs + the resident accumulator.
        return 2 * x_tile + 2 * weight_bytes + 2 * out_blk + acc, x_tile

    # Batch tile: ensure >=2 blocks on the "parallel" axis when B allows it so
    # v7x's second TensorCore gets work; keep bt a multiple of 8 dividing B.
    bt = B
    if B >= 16 and B % 16 == 0:
        bt = B // 2

    # Spatial tile: grow in 128-lane steps while the doubled footprint fits.
    ht = 128
    while HW_pad % (ht * 2) == 0:
        tot, x_tile = footprint(bt, ht * 2)
        if tot > budget or x_tile > x_tile_cap:
            break
        ht *= 2

    # If even the smallest spatial tile busts the budget, shrink the batch tile.
    while footprint(bt, ht)[0] > budget and bt % 16 == 0 and bt > 8:
        bt //= 2

    return bt, ht, footprint(bt, ht)[0]


def multi_head_center_classifier(x, params, temperature=0.05,
                                 b_tile=None, hw_tile=None):
    """x: (B, C, H, W) NCHW (f32 or bf16). Returns (logit_g, logit_v, logit_c)."""
    (w_lin, b_lin, bn_gamma, bn_beta, bn_mean, bn_var, w_g, w_v, w_c) = params
    B, C, H, W = x.shape
    HW = H * W
    dim = w_lin.shape[1]

    # ---- wrapper-side constant folding / layout plumbing --------------------
    # Fold eval-mode BatchNorm1d into the linear and zero-pad `dim` to a
    # lane-dense multiple of 128 (zero columns change neither norm nor logits).
    dim_pad = _round_up(dim, 128)
    s = (bn_gamma / jnp.sqrt(bn_var + _BN_EPS)).astype(jnp.float32)
    w_f = jnp.zeros((C, dim_pad), jnp.float32).at[:, :dim].set(
        w_lin.astype(jnp.float32) * s[None, :])
    b_f = jnp.zeros((1, dim_pad), jnp.float32).at[:, :dim].set(
        ((b_lin.astype(jnp.float32) - bn_mean) * s + bn_beta)[None, :])

    def _l2n(w):
        w = w.astype(jnp.float32)
        return w / jnp.maximum(jnp.linalg.norm(w, axis=-1, keepdims=True),
                               _NORM_EPS)

    n_g, n_v, n_c = w_g.shape[0], w_v.shape[0], w_c.shape[0]
    n_tot = n_g + n_v + n_c
    n_pad = _round_up(max(n_tot, 128), 128)
    wn_t = jnp.zeros((dim_pad, n_pad), jnp.float32).at[:dim, :n_tot].set(
        jnp.concatenate([_l2n(w_g), _l2n(w_v), _l2n(w_c)], axis=0).T)

    # Zero-pad H*W to a multiple of 128 (zeros don't affect the spatial sum;
    # inv_hw keeps the true mean).  Keeps 128-wide, pipelined x tiles even for
    # non-aligned feature maps (7x7, 10x10, ...).
    HW_pad = _round_up(HW, 128)
    x_flat = x.reshape(B, C, HW)
    if HW_pad != HW:
        x_flat = jnp.pad(x_flat, ((0, 0), (0, 0), (0, HW_pad - HW)))

    vmem_cap = _vmem_capacity_bytes()
    bt, ht, fp_bytes = _pick_tiles(B, C, HW_pad, x_flat.dtype.itemsize,
                                   dim_pad, n_pad, vmem_cap)
    if b_tile is not None:
        bt = b_tile
    if hw_tile is not None:
        ht = hw_tile
    assert B % bt == 0 and HW_pad % ht == 0 and ht % 128 == 0, \
        "tile sizes must divide the (padded) array and be 128-lane aligned"
    grid = (B // bt, HW_pad // ht)

    # Scoped-VMEM limit sized from the real footprint with headroom, capped per
    # generation (keeps v7x's 64 MiB comfortable, lets v5e/v6e use big tiles).
    vmem_limit = int(min(vmem_cap * 0.7, max(fp_bytes + (8 << 20), 32 << 20)))

    kernel = functools.partial(_mhcc_kernel,
                               inv_hw=1.0 / HW, inv_temp=1.0 / temperature)

    # NOTE: the weight inputs (w_f, b_f, wn_t) have constant index_maps, so the
    # pipeline fetches them once; their extra pipeline buffer is accounted for
    # in the footprint budget above.
    out = pl.pallas_call(
        kernel,
        out_shape=jax.ShapeDtypeStruct((B, n_pad), jnp.float32),
        grid_spec=pltpu.PrefetchScalarGridSpec(
            num_scalar_prefetch=0,
            grid=grid,
            in_specs=[
                pl.BlockSpec((bt, C, ht), lambda b, h: (b, 0, h)),    # x tiles
                pl.BlockSpec((C, dim_pad), lambda b, h: (0, 0)),      # folded W
                pl.BlockSpec((1, dim_pad), lambda b, h: (0, 0)),      # folded b
                pl.BlockSpec((dim_pad, n_pad), lambda b, h: (0, 0)),  # centers^T
            ],
            out_specs=pl.BlockSpec((bt, n_pad), lambda b, h: (b, 0)),
            scratch_shapes=[pltpu.VMEM((bt, C, 128), jnp.float32)],
        ),
        compiler_params=pltpu.CompilerParams(
            dimension_semantics=("parallel", "arbitrary"),
            vmem_limit_bytes=vmem_limit,
        ),
    )(x_flat, w_f, b_f, wn_t)

    logit_g = out[:, :n_g]
    logit_v = out[:, n_g:n_g + n_v]
    logit_c = out[:, n_g + n_v:n_tot]
    return logit_g, logit_v, logit_c


def _make_params(key, in_channel, dim, n_g, n_v, n_c):
    """Deterministic parameter init matching the PyTorch module's __init__."""
    lin_bound = 1.0 / math.sqrt(in_channel)   # nn.Linear default init range
    cen_bound = 1.0 / math.sqrt(dim)          # center-weight init range
    ks = jax.random.split(key, 5)
    w_lin = jax.random.uniform(ks[0], (in_channel, dim), jnp.float32,
                               -lin_bound, lin_bound)   # stored as W.T
    b_lin = jax.random.uniform(ks[1], (dim,), jnp.float32,
                               -lin_bound, lin_bound)
    bn_gamma = jnp.ones((dim,), jnp.float32)
    bn_beta = jnp.zeros((dim,), jnp.float32)
    bn_mean = jnp.zeros((dim,), jnp.float32)
    bn_var = jnp.ones((dim,), jnp.float32)
    w_g = jax.random.uniform(ks[2], (n_g, dim), jnp.float32, -cen_bound, cen_bound)
    w_v = jax.random.uniform(ks[3], (n_v, dim), jnp.float32, -cen_bound, cen_bound)
    w_c = jax.random.uniform(ks[4], (n_c, dim), jnp.float32, -cen_bound, cen_bound)
    return (w_lin, b_lin, bn_gamma, bn_beta, bn_mean, bn_var, w_g, w_v, w_c)


def _ref_forward(x, params, temperature=0.05):
    """Plain-JAX reference mirroring the PyTorch module (eval-mode BN)."""
    (w_lin, b_lin, bn_gamma, bn_beta, bn_mean, bn_var, w_g, w_v, w_c) = params
    B, C, H, W = x.shape
    pooled = x.astype(jnp.float32).reshape(B, C, H * W).mean(axis=-1)
    h = pooled @ w_lin + b_lin
    h = (h - bn_mean) / jnp.sqrt(bn_var + _BN_EPS) * bn_gamma + bn_beta
    hn = h / jnp.maximum(jnp.linalg.norm(h, axis=-1, keepdims=True), _NORM_EPS)

    def head(w):
        wn = w / jnp.maximum(jnp.linalg.norm(w, axis=-1, keepdims=True),
                             _NORM_EPS)
        return hn @ wn.T / temperature

    return head(w_g), head(w_v), head(w_c)


if __name__ == "__main__":
    temperature = 0.05
    dim = 64
    n_g, n_v, n_c = 168, 11, 7

    key = jax.random.PRNGKey(0)
    k_x1, k_x2, k_p = jax.random.split(key, 3)

    # Case 1: 128-aligned H*W; batch large enough to exercise the batch split.
    B, C, H, W = 16, 32, 16, 16
    x1 = jax.random.normal(k_x1, (B, C, H, W), jnp.float32)
    params = _make_params(k_p, C, dim, n_g, n_v, n_c)

    ref1 = _ref_forward(x1, params, temperature)
    out1 = jax.block_until_ready(
        multi_head_center_classifier(x1, params, temperature=temperature))
    # Forced small tiles: exercises the multi-step spatial accumulation and the
    # batch ("parallel") grid axis.
    out1_tiled = jax.block_until_ready(
        multi_head_center_classifier(x1, params, temperature=temperature,
                                     b_tile=8, hw_tile=128))

    # Case 2: non-128-aligned H*W (10x10 feature map -> zero-padded to 128).
    x2 = jax.random.normal(k_x2, (B, C, 10, 10), jnp.float32)
    ref2 = _ref_forward(x2, params, temperature)
    out2 = jax.block_until_ready(
        multi_head_center_classifier(x2, params, temperature=temperature))

    for got, ref in ((out1, ref1), (out1_tiled, ref1), (out2, ref2)):
        for o, r in zip(got, ref):
            assert o.shape == r.shape and o.dtype == jnp.float32
            assert jnp.allclose(o, r, rtol=1e-4, atol=2e-4), "mismatch vs reference"

    print("KERNEL_OK")
</pallas_src>

<mosaic_0001>
module attributes {stable_mosaic.version = 11 : i64} {
  func.func @_mhcc_kernel(%arg0: i32, %arg1: i32, %arg2: memref<8x32x256xf32, #tpu.memory_space<vmem>>, %arg3: memref<32x128xf32, #tpu.memory_space<vmem>>, %arg4: memref<1x128xf32, #tpu.memory_space<vmem>>, %arg5: memref<128x256xf32, #tpu.memory_space<vmem>>, %arg6: memref<8x256xf32, #tpu.memory_space<vmem>>, %arg7: memref<8x32x128xf32, #tpu.memory_space<vmem>>) attributes {dimension_semantics = [#tpu.dimension_semantics<parallel>, #tpu.dimension_semantics<arbitrary>], iteration_bounds = array<i64: 2, 1>, scalar_prefetch = 0 : i64, scratch_operands = 1 : i64, tpu.core_type = #tpu.core_type<tc>, window_params = [{transform_indices = @transform_0, window_bounds = array<i64: 8, 32, 256>}, {pipeline_mode = #tpu.pipeline_mode<synchronous>, transform_indices = @transform_1, window_bounds = array<i64: 32, 128>}, {pipeline_mode = #tpu.pipeline_mode<synchronous>, transform_indices = @transform_2, window_bounds = array<i64: 1, 128>}, {pipeline_mode = #tpu.pipeline_mode<synchronous>, transform_indices = @transform_3, window_bounds = array<i64: 128, 256>}, {transform_indices = @transform_4, window_bounds = array<i64: 8, 256>}]} {
    %c0_i32 = arith.constant 0 : i32
    %0 = arith.cmpi eq, %arg1, %c0_i32 : i32
    %1 = arith.extui %0 : i1 to i32
    %c0_i32_0 = arith.constant 0 : i32
    %2 = arith.cmpi ne, %1, %c0_i32_0 : i32
    scf.if %2 {
      %cst = arith.constant 0.000000e+00 : f32
      %14 = vector.broadcast %cst : f32 to vector<8x32x128xf32>
      %c0_19 = arith.constant 0 : index
      %c0_20 = arith.constant 0 : index
      %c0_21 = arith.constant 0 : index
      %15 = vector.load %arg7[%c0_19, %c0_20, %c0_21] : memref<8x32x128xf32, #tpu.memory_space<vmem>>, vector<8x32x128xf32>
      tpu.vector_store %arg7[%c0_19, %c0_20, %c0_21], %14 {strides = array<i32>} : memref<8x32x128xf32, #tpu.memory_space<vmem>>, vector<8x32x128xf32>,
    } else {
    }
    %c0 = arith.constant 0 : index
    %c0_1 = arith.constant 0 : index
    %c0_2 = arith.constant 0 : index
    %3 = vector.load %arg7[%c0, %c0_1, %c0_2] : memref<8x32x128xf32, #tpu.memory_space<vmem>>, vector<8x32x128xf32>
    %c0_3 = arith.constant 0 : index
    %c0_4 = arith.constant 0 : index
    %c0_5 = arith.constant 0 : index
    %4 = vector.load %arg2[%c0_3, %c0_4, %c0_5] : memref<8x32x256xf32, #tpu.memory_space<vmem>>, vector<8x32x128xf32>
    %5 = arith.addf %3, %4 : vector<8x32x128xf32>
    %c0_6 = arith.constant 0 : index
    %c0_7 = arith.constant 0 : index
    %c0_8 = arith.constant 0 : index
    %6 = vector.load %arg7[%c0_6, %c0_7, %c0_8] : memref<8x32x128xf32, #tpu.memory_space<vmem>>, vector<8x32x128xf32>
    tpu.vector_store %arg7[%c0_6, %c0_7, %c0_8], %5 {strides = array<i32>} : memref<8x32x128xf32, #tpu.memory_space<vmem>>, vector<8x32x128xf32>,
    %c0_9 = arith.constant 0 : index
    %c0_10 = arith.constant 0 : index
    %c0_11 = arith.constant 0 : index
    %7 = vector.load %arg7[%c0_9, %c0_10, %c0_11] : memref<8x32x128xf32, #tpu.memory_space<vmem>>, vector<8x32x128xf32>
    %c0_12 = arith.constant 0 : index
    %c0_13 = arith.constant 0 : index
    %c128 = arith.constant 128 : index
    %8 = vector.load %arg2[%c0_12, %c0_13, %c128] : memref<8x32x256xf32, #tpu.memory_space<vmem>>, vector<8x32x128xf32>
    %9 = arith.addf %7, %8 : vector<8x32x128xf32>
    %c0_14 = arith.constant 0 : index
    %c0_15 = arith.constant 0 : index
    %c0_16 = arith.constant 0 : index
    %10 = vector.load %arg7[%c0_14, %c0_15, %c0_16] : memref<8x32x128xf32, #tpu.memory_space<vmem>>, vector<8x32x128xf32>
    tpu.vector_store %arg7[%c0_14, %c0_15, %c0_16], %9 {strides = array<i32>} : memref<8x32x128xf32, #tpu.memory_space<vmem>>, vector<8x32x128xf32>,
    %c0_i32_17 = arith.constant 0 : i32
    %11 = arith.cmpi eq, %arg1, %c0_i32_17 : i32
    %12 = arith.extui %11 : i1 to i32
    %c0_i32_18 = arith.constant 0 : i32
    %13 = arith.cmpi ne, %12, %c0_i32_18 : i32
    scf.if %13 {
      %c0_19 = arith.constant 0 : index
      %c0_20 = arith.constant 0 : index
      %c0_21 = arith.constant 0 : index
      %14 = vector.load %arg7[%c0_19, %c0_20, %c0_21] : memref<8x32x128xf32, #tpu.memory_space<vmem>>, vector<8x32x128xf32>
      %cst = arith.constant dense<0.000000e+00> : vector<8x32xf32>
      %15 = vector.multi_reduction <add>, %14, %cst [2] : vector<8x32x128xf32> to vector<8x32xf32>
      %cst_22 = arith.constant 3.906250e-03 : f32
      %16 = vector.broadcast %cst_22 : f32 to vector<8x32xf32>
      %17 = arith.mulf %15, %16 : vector<8x32xf32>
      %c0_23 = arith.constant 0 : index
      %c0_24 = arith.constant 0 : index
      %18 = vector.load %arg3[%c0_23, %c0_24] : memref<32x128xf32, #tpu.memory_space<vmem>>, vector<32x128xf32>
      %cst_25 = arith.constant dense<0.000000e+00> : vector<8x128xf32>
      %19 = tpu.matmul %17, %18, %cst_25 {dimension_numbers = #tpu.dot_dimension_numbers<[1], [0], [0], [1], [0, 0, 1, 1], [], []>} : vector<8x32xf32>, vector<32x128xf32>, vector<8x128xf32> -> vector<8x128xf32>
      %c0_26 = arith.constant 0 : index
      %c0_27 = arith.constant 0 : index
      %20 = vector.load %arg4[%c0_26, %c0_27] : memref<1x128xf32, #tpu.memory_space<vmem>>, vector<1x128xf32>
      %21 = vector.broadcast %20 : vector<1x128xf32> to vector<8x128xf32>
      %22 = arith.addf %19, %21 : vector<8x128xf32>
      %23 = arith.mulf %22, %22 : vector<8x128xf32>
      %cst_28 = arith.constant dense<0.000000e+00> : vector<8xf32>
      %24 = vector.multi_reduction <add>, %23, %cst_28 [1] : vector<8x128xf32> to vector<8xf32>
      %25 = vector.shape_cast %24 : vector<8xf32> to vector<8x1xf32>
      %cst_29 = arith.constant 1.000000e-24 : f32
      %26 = vector.broadcast %cst_29 : f32 to vector<8x1xf32>
      %27 = arith.maximumf %25, %26 : vector<8x1xf32>
      %28 = math.rsqrt %27 : vector<8x1xf32>
      %29 = vector.broadcast %28 : vector<8x1xf32> to vector<8x128xf32>
      %30 = arith.mulf %22, %29 : vector<8x128xf32>
      %c0_30 = arith.constant 0 : index
      %c0_31 = arith.constant 0 : index
      %31 = vector.load %arg5[%c0_30, %c0_31] : memref<128x256xf32, #tpu.memory_space<vmem>>, vector<128x256xf32>
      %cst_32 = arith.constant dense<0.000000e+00> : vector<8x256xf32>
      %32 = tpu.matmul %30, %31, %cst_32 {dimension_numbers = #tpu.dot_dimension_numbers<[1], [0], [0], [1], [0, 0, 1, 1], [], []>} : vector<8x128xf32>, vector<128x256xf32>, vector<8x256xf32> -> vector<8x256xf32>
      %cst_33 = arith.constant 2.000000e+01 : f32
      %33 = vector.broadcast %cst_33 : f32 to vector<8x256xf32>
      %34 = arith.mulf %32, %33 : vector<8x256xf32>
      %c0_34 = arith.constant 0 : index
      %c0_35 = arith.constant 0 : index
      %35 = vector.load %arg6[%c0_34, %c0_35] : memref<8x256xf32, #tpu.memory_space<vmem>>, vector<8x256xf32>
      tpu.vector_store %arg6[%c0_34, %c0_35], %34 {strides = array<i32>} : memref<8x256xf32, #tpu.memory_space<vmem>>, vector<8x256xf32>,
    } else {
    }
    return
  }
  func.func @transform_0(%arg0: i32, %arg1: i32) -> (i32, i32, i32) {
    %c0_i32 = arith.constant 0 : i32
    %c0_i32_0 = arith.constant 0 : i32
    return %arg0, %c0_i32, %arg1 : i32, i32, i32
  }
  func.func @transform_1(%arg0: i32, %arg1: i32) -> (i32, i32) {
    %c0_i32 = arith.constant 0 : i32
    %c0_i32_0 = arith.constant 0 : i32
    %c0_i32_1 = arith.constant 0 : i32
    return %c0_i32, %c0_i32_0 : i32, i32
  }
  func.func @transform_2(%arg0: i32, %arg1: i32) -> (i32, i32) {
    %c0_i32 = arith.constant 0 : i32
    %c0_i32_0 = arith.constant 0 : i32
    %c0_i32_1 = arith.constant 0 : i32
    return %c0_i32, %c0_i32_0 : i32, i32
  }
  func.func @transform_3(%arg0: i32, %arg1: i32) -> (i32, i32) {
    %c0_i32 = arith.constant 0 : i32
    %c0_i32_0 = arith.constant 0 : i32
    %c0_i32_1 = arith.constant 0 : i32
    return %c0_i32, %c0_i32_0 : i32, i32
  }
  func.func @transform_4(%arg0: i32, %arg1: i32) -> (i32, i32) {
    %c0_i32 = arith.constant 0 : i32
    %c0_i32_0 = arith.constant 0 : i32
    return %arg0, %c0_i32 : i32, i32
  }
}

</mosaic_0001>

<llo_original>
// kernel: tpu_custom_call.1
$region0: #{tpu_custom_call.1}
  #allocation0 [shape = 'u32[]', space=smem, size = 0x4, offset = 0x4, fixed_abs, tag = 'smem constant byte address 0x4 - core index']
  #allocation1 [shape = 'u32[72,128]{1,0:T(1,128)}', space=vmem, size = 0x9000, scoped, tag = 'internal scratch']
  #allocation2 [shape = 'f32[8,32,128]{2,1,0:T(8,128)}', space=vmem, size = 0x20000, scoped, tag = 'scratch operand']
  %s0 = inlined_call_operand.hbm [shape: f32[16,32,256], index: 0, kind: input, shape index: {}]
  %s1 = inlined_call_operand.hbm [shape: f32[32,128], index: 1, kind: input, shape index: {}]
  %s2 = inlined_call_operand.vmem [shape: f32[1,128], index: 2, kind: input, shape index: {}]
  %s3 = inlined_call_operand.hbm [shape: f32[128,256], index: 3, kind: input, shape index: {}]
  %s4 = inlined_call_operand.hbm [shape: f32[16,256], index: 4, kind: output, shape index: {}]
  %s5 = sld [smem:[#allocation0]]
  $region69: #{tpu_custom_call.1} parent=0
    _
  %s7 = ssub.s32 1, %s5
  %s8 = scalar_select 0, %s7, %s5
  $region1: #{tpu_custom_call.1} parent=0
    #allocation3 [shape = 'u8[524288]{0}', space=vmem, size = 0x80000, scoped, tag = 'input window, operand 0']
    #allocation4 [shape = 's32[2]{0}', space=sflag, size = 0x8, scoped, tag = 'scoped memory for tpu_custom_call.1']
    #allocation5 [shape = 's32[2]{0}', space=sflag, size = 0x8, scoped, tag = 'scoped memory for tpu_custom_call.1']
    #allocation6 [shape = 'u8[16384]{0}', space=vmem, size = 0x4000, scoped, tag = 'input window, operand 1, single buffered']
    #allocation7 [shape = 's32[1]{0}', space=sflag, size = 0x4, scoped, tag = 'scoped memory for tpu_custom_call.1']
    #allocation8 [shape = 'u8[131072]{0}', space=vmem, size = 0x20000, scoped, tag = 'input window, operand 3, single buffered']
    #allocation9 [shape = 'u8[16384]{0}', space=vmem, size = 0x4000, scoped, tag = 'output window, operand 0']
    %9 = vsyncpa [#allocation4], 0
    %s10 = scalar_lea.sflag [#allocation4], 1
    %11 = vsyncpa %s10, 0
    %12 = vsyncpa [#allocation7], 0
    %13 = vsyncpa [#allocation5], 0
    %s14 = scalar_lea.sflag [#allocation5], 1
    %15 = vsyncpa %s14, 0
    loop: start=0, step=1, limit=4
    $region2: #{tpu_custom_call.1} parent=1 // loop_pre_header
      _
    $region3: #{tpu_custom_call.1} parent=1 // loop_header
      %s17 = sphi 0, %s21
      %p18 = scmp.ge.s32.totalorder %s17, 4
      %s24 = sphi 0, %s36
      %s25 = sphi 0, %s32
      %s26 = sphi 0, %s24
      %s27 = sphi 0, %s25
      %s28 = sphi 0, %s26
      %s29 = sphi 0, %s27
      %s41 = sphi 0, %s43
      %s44 = sphi 0, %s41
      %s45 = sphi 0, %s44
      %s61 = sphi 0, %s45
      %s65 = sphi 0, %s65
      %s67 = sphi 0, %s65
      %s68 = sphi 0, %s67
      %s82 = sphi 0, %s68
      %s86 = sphi 0, %s86
      %s88 = sphi 0, %s86
      %s89 = sphi 0, %s88
      %s103 = sphi 0, %s89
      %s107 = sphi 0, %s107
      %s109 = sphi 0, %s107
      %s110 = sphi 0, %s109
      %s124 = sphi 0, %s110
      %s130 = sphi 0, %s132
      %s133 = sphi 0, %s130
      %s134 = sphi 0, %s133
      %s150 = sphi 0, %s134
    $region4: #{tpu_custom_call.1} parent=1 // loop_header_branch
      %20 = sbr.rel (%p18) target = $region8
    $region5: #{tpu_custom_call.1} parent=1 // loop_body
      %s22 = ssub.s32 %s17, 1
      %s23 = ssub.s32 %s17, 2
      %s30 = sadd.s32 1, %s25
      %p31 = scmp.ge.s32.totalorder %s30, 1
      %s32 = scalar_select %p31, 0, %s30
      %s33 = sadd.s32 1, %s24
      %s34 = scalar_select %p31, %s33, %s24
      %p35 = scmp.ge.s32.totalorder %s34, 2
      %s36 = scalar_select %p35, 0, %s34
      %s37 = ssub.s32 %s24, %s36
      %s38 = ssub.s32 %s25, %s32
      %s39 = sor.u32 %s37, %s38
      %p40 = scmp.eq.s32.totalorder %s39, 0
      %s42 = sadd.s32 %s41, 1
      %s43 = scalar_select %p40, %s41, %s42
      %p46 = pneg %p40
      %p47 = scmp.eq.s32.totalorder %s17, 1
      %p48 = por %p46, %p47
      %p49 = scmp.ne.s32.totalorder %s41, %s44
      %p50 = scmp.eq.s32.totalorder %s17, 0
      %p51 = por %p49, %p50
      %p52 = scmp.ne.s32.totalorder %s41, %s44
      %p53 = scmp.eq.s32.totalorder %s22, 1
      %p54 = por %p52, %p53
      %p55 = scmp.ne.s32.totalorder %s44, %s45
      %p56 = scmp.eq.s32.totalorder %s22, 0
      %p57 = por %p55, %p56
      %p58 = scmp.ne.s32.totalorder %s44, %s45
      %p59 = scmp.eq.s32.totalorder %s23, 1
      %p60 = por %p58, %p59
      %p62 = scmp.ne.s32.totalorder %s45, %s61
      %p63 = scmp.eq.s32.totalorder %s23, 0
      %p64 = por %p62, %p63
      %s66 = sadd.s32 %s65, 1
      %p69 = scmp.eq.s32.totalorder %s17, 1
      %p70 = scmp.ne.s32.totalorder %s65, %s67
      %p71 = scmp.eq.s32.totalorder %s17, 0
      %p72 = por %p70, %p71
      %p73 = scmp.ne.s32.totalorder %s65, %s67
      %p74 = scmp.eq.s32.totalorder %s22, 1
      %p75 = por %p73, %p74
      %p76 = scmp.ne.s32.totalorder %s67, %s68
      %p77 = scmp.eq.s32.totalorder %s22, 0
      %p78 = por %p76, %p77
      %p79 = scmp.ne.s32.totalorder %s67, %s68
      %p80 = scmp.eq.s32.totalorder %s23, 1
      %p81 = por %p79, %p80
      %p83 = scmp.ne.s32.totalorder %s68, %s82
      %p84 = scmp.eq.s32.totalorder %s23, 0
      %p85 = por %p83, %p84
      %s87 = sadd.s32 %s86, 1
      %p90 = scmp.eq.s32.totalorder %s17, 1
      %p91 = scmp.ne.s32.totalorder %s86, %s88
      %p92 = scmp.eq.s32.totalorder %s17, 0
      %p93 = por %p91, %p92
      %p94 = scmp.ne.s32.totalorder %s86, %s88
      %p95 = scmp.eq.s32.totalorder %s22, 1
      %p96 = por %p94, %p95
      %p97 = scmp.ne.s32.totalorder %s88, %s89
      %p98 = scmp.eq.s32.totalorder %s22, 0
      %p99 = por %p97, %p98
      %p100 = scmp.ne.s32.totalorder %s88, %s89
      %p101 = scmp.eq.s32.totalorder %s23, 1
      %p102 = por %p100, %p101
      %p104 = scmp.ne.s32.totalorder %s89, %s103
      %p105 = scmp.eq.s32.totalorder %s23, 0
      %p106 = por %p104, %p105
      %s108 = sadd.s32 %s107, 1
      %p111 = scmp.eq.s32.totalorder %s17, 1
      %p112 = scmp.ne.s32.totalorder %s107, %s109
      %p113 = scmp.eq.s32.totalorder %s17, 0
      %p114 = por %p112, %p113
      %p115 = scmp.ne.s32.totalorder %s107, %s109
      %p116 = scmp.eq.s32.totalorder %s22, 1
      %p117 = por %p115, %p116
      %p118 = scmp.ne.s32.totalorder %s109, %s110
      %p119 = scmp.eq.s32.totalorder %s22, 0
      %p120 = por %p118, %p119
      %p121 = scmp.ne.s32.totalorder %s109, %s110
      %p122 = scmp.eq.s32.totalorder %s23, 1
      %p123 = por %p121, %p122
      %p125 = scmp.ne.s32.totalorder %s110, %s124
      %p126 = scmp.eq.s32.totalorder %s23, 0
      %p127 = por %p125, %p126
      %s128 = ssub.s32 %s24, %s36
      %p129 = scmp.eq.s32.totalorder %s128, 0
      %s131 = sadd.s32 %s130, 1
      %s132 = scalar_select %p129, %s130, %s131
      %p135 = pneg %p129
      %p136 = scmp.eq.s32.totalorder %s17, 1
      %p137 = por %p135, %p136
      %p138 = scmp.ne.s32.totalorder %s130, %s133
      %p139 = scmp.eq.s32.totalorder %s17, 0
      %p140 = por %p138, %p139
      %p141 = scmp.ne.s32.totalorder %s130, %s133
      %p142 = scmp.eq.s32.totalorder %s22, 1
      %p143 = por %p141, %p142
      %p144 = scmp.ne.s32.totalorder %s133, %s134
      %p145 = scmp.eq.s32.totalorder %s22, 0
      %p146 = por %p144, %p145
      %p147 = scmp.ne.s32.totalorder %s133, %s134
      %p148 = scmp.eq.s32.totalorder %s23, 1
      %p149 = por %p147, %p148
      %p151 = scmp.ne.s32.totalorder %s134, %s150
      %p152 = scmp.eq.s32.totalorder %s23, 0
      %p153 = por %p151, %p152
      %p154 = scmp.le.s32.totalorder 1, %s17
      %p155 = scmp.lt.s32.totalorder %s17, 3
      %p156 = pnand %p154, %p155
      %p157 = pneg %p156
      // Predicated region
      $region9: #{tpu_custom_call.1} parent=5 // pred_check
        _
      $region10: #{tpu_custom_call.1} parent=5 // pred_check_branch
        %159 = sbr.rel (%p156) target = $region12
      $region11: #{tpu_custom_call.1} parent=5 // pred_region
        %s160 = ssub.s32 %s17, 1
        // Predicated region
        $region13: #{tpu_custom_call.1} parent=11 // pred_check
          %p161 = pneg %p78
        $region14: #{tpu_custom_call.1} parent=11 // pred_check_branch
          %163 = sbr.rel (%p161) target = $region16
        $region15: #{tpu_custom_call.1} parent=11 // pred_region
          %165 = vsyncadd [#allocation7], 0
          %s166 = sshll.u32 %s1, 4
          %s167 = int_to_ptr.hbm [resolvable:$true] %s166
          %s168 = sshll.u32 [#allocation6], 4
          %s169 = int_to_ptr.vmem [resolvable:$true] %s168
          %174 = dma.hbm_to_vmem [thread:$0]  %s167, 512, %s169, [#allocation7], 128, 128, 8
        $region16: #{tpu_custom_call.1} parent=11 // pred_fallthru
          _
        // Predicated region
        $region17: #{tpu_custom_call.1} parent=11 // pred_check
          %p175 = pneg %p99
        $region18: #{tpu_custom_call.1} parent=11 // pred_check_branch
          %177 = sbr.rel (%p175) target = $region20
        $region19: #{tpu_custom_call.1} parent=11 // pred_region
          _
        $region20: #{tpu_custom_call.1} parent=11 // pred_fallthru
          _
        // Predicated region
        $region21: #{tpu_custom_call.1} parent=11 // pred_check
          %p178 = pneg %p120
        $region22: #{tpu_custom_call.1} parent=11 // pred_check_branch
          %180 = sbr.rel (%p178) target = $region24
        $region23: #{tpu_custom_call.1} parent=11 // pred_region
          %182 = vsyncadd [#allocation7], 0
          %s183 = sshll.u32 %s3, 4
          %s184 = int_to_ptr.hbm [resolvable:$true] %s183
          %s185 = sshll.u32 [#allocation8], 4
          %s186 = int_to_ptr.vmem [resolvable:$true] %s185
          %191 = dma.hbm_to_vmem [thread:$0]  %s184, 4096, %s186, [#allocation7], 256, 256, 16
        $region24: #{tpu_custom_call.1} parent=11 // pred_fallthru
          _
      $region12: #{tpu_custom_call.1} parent=5 // pred_fallthru
        _
      %p192 = scmp.lt.s32.totalorder %s17, 2
      // Predicated region
      $region25: #{tpu_custom_call.1} parent=5 // pred_check
        %p193 = pneg %p192
      $region26: #{tpu_custom_call.1} parent=5 // pred_check_branch
        %195 = sbr.rel (%p193) target = $region28
      $region27: #{tpu_custom_call.1} parent=5 // pred_region
        // Predicated region
        $region29: #{tpu_custom_call.1} parent=27 // pred_check
          %p196 = pneg %p51
        $region30: #{tpu_custom_call.1} parent=27 // pred_check_branch
          %198 = sbr.rel (%p196) target = $region32
        $region31: #{tpu_custom_call.1} parent=27 // pred_region
          %s199 = sand.u32 %s41, 1
          %s200 = scalar_lea.sflag [#allocation4], %s199
          %s201 = sand.u32 %s41, 1
          %s202 = smul.addr %s201, 512
          %s203 = scalar_lea.vmem [#allocation3], %s202
          %s204 = smul.u32 8, %s24
          %s205 = smul.u32 2, %s25
          %207 = vsyncadd %s200, 0
          %s208 = smul.addr %s204, 8
          %s209 = sadd.s32 %s205, %s208
          %s210 = smul.addr %s209, 8
          %s211 = scalar_lea.hbm %s0, %s210
          %s212 = sshll.u32 %s211, 4
          %s213 = int_to_ptr.hbm [resolvable:$true] %s212
          %s214 = sshll.u32 %s203, 4
          %s215 = int_to_ptr.vmem [resolvable:$true] %s214
          %220 = dma.hbm_to_vmem [thread:$0]  %s213, 8192, %s215, %s200, 256, 256, 16
        $region32: #{tpu_custom_call.1} parent=27 // pred_fallthru
          _
      $region28: #{tpu_custom_call.1} parent=5 // pred_fallthru
        _
      %p221 = scmp.le.s32.totalorder 1, %s17
      %p222 = scmp.lt.s32.totalorder %s17, 3
      %p223 = pnand %p221, %p222
      %p224 = pneg %p223
      // Predicated region
      $region33: #{tpu_custom_call.1} parent=5 // pred_check
        _
      $region34: #{tpu_custom_call.1} parent=5 // pred_check_branch
        %226 = sbr.rel (%p223) target = $region36
      $region35: #{tpu_custom_call.1} parent=5 // pred_region
        %s227 = ssub.s32 %s17, 1
        %s228 = sand.u32 %s44, 1
        %s229 = scalar_lea.sflag [#allocation4], %s228
        %s230 = sand.u32 %s44, 1
        %s231 = smul.addr %s230, 512
        %s232 = scalar_lea.vmem [#allocation3], %s231
        // Predicated region
        $region37: #{tpu_custom_call.1} parent=35 // pred_check
          %p233 = pneg %p57
        $region38: #{tpu_custom_call.1} parent=35 // pred_check_branch
          %235 = sbr.rel (%p233) target = $region40
        $region39: #{tpu_custom_call.1} parent=35 // pred_region
          %237 = dma.done %s229, 8192
        $region40: #{tpu_custom_call.1} parent=35 // pred_fallthru
          _
        // Predicated region
        $region41: #{tpu_custom_call.1} parent=35 // pred_check
          %p238 = pneg %p78
        $region42: #{tpu_custom_call.1} parent=35 // pred_check_branch
          %240 = sbr.rel (%p238) target = $region44
        $region43: #{tpu_custom_call.1} parent=35 // pred_region
          %242 = dma.done [#allocation7], 512
        $region44: #{tpu_custom_call.1} parent=35 // pred_fallthru
          _
        // Predicated region
        $region45: #{tpu_custom_call.1} parent=35 // pred_check
          %p243 = pneg %p120
        $region46: #{tpu_custom_call.1} parent=35 // pred_check_branch
          %245 = sbr.rel (%p243) target = $region48
        $region47: #{tpu_custom_call.1} parent=35 // pred_region
          %247 = dma.done [#allocation7], 4096
        $region48: #{tpu_custom_call.1} parent=35 // pred_fallthru
          _
        %s248 = sand.u32 %s44, 1
        %s249 = scalar_lea.sflag [#allocation4], %s248
        %s250 = sand.u32 %s44, 1
        %s251 = smul.addr %s250, 512
        %s252 = scalar_lea.vmem [#allocation3], %s251
        %p253 = pneg %p57
        %p254 = pneg %p54
        %p255 = pneg %p78
        %p256 = pneg %p75
        %p257 = pneg %p99
        %p258 = pneg %p96
        %p259 = pneg %p120
        %p260 = pneg %p117
        %p261 = pneg %p146
        %p262 = pneg %p143
        %s263 = sand.u32 %s133, 1
        %s264 = scalar_lea.sflag [#allocation5], %s263
        %s265 = sand.u32 %s133, 1
        %s266 = smul.addr %s265, 16
        %s267 = scalar_lea.vmem [#allocation9], %s266
        %s268 = smul.u32 8, %s26
        %s269 = smul.u32 2, %s27
        %p270 = scmp.eq.s32.totalorder %s27, 0
        // Predicated region
        $region49: #{tpu_custom_call.1} parent=35 // pred_check
          %p271 = pneg %p270
        $region50: #{tpu_custom_call.1} parent=35 // pred_check_branch
          %273 = sbr.rel (%p271) target = $region52
        $region51: #{tpu_custom_call.1} parent=35 // pred_region
          %274 = vst [vmem:[#allocation2] sm:$0xff] 0.0
          %275 = vst [vmem:[#allocation2 + $0x8] sm:$0xff] 0.0
          %276 = vst [vmem:[#allocation2 + $0x10] sm:$0xff] 0.0
          %277 = vst [vmem:[#allocation2 + $0x18] sm:$0xff] 0.0
          %278 = vst [vmem:[#allocation2 + $0x20] sm:$0xff] 0.0
          %279 = vst [vmem:[#allocation2 + $0x28] sm:$0xff] 0.0
          %280 = vst [vmem:[#allocation2 + $0x30] sm:$0xff] 0.0
          %281 = vst [vmem:[#allocation2 + $0x38] sm:$0xff] 0.0
          %282 = vst [vmem:[#allocation2 + $0x40] sm:$0xff] 0.0
          %283 = vst [vmem:[#allocation2 + $0x48] sm:$0xff] 0.0
          %284 = vst [vmem:[#allocation2 + $0x50] sm:$0xff] 0.0
          %285 = vst [vmem:[#allocation2 + $0x58] sm:$0xff] 0.0
          %286 = vst [vmem:[#allocation2 + $0x60] sm:$0xff] 0.0
          %287 = vst [vmem:[#allocation2 + $0x68] sm:$0xff] 0.0
          %288 = vst [vmem:[#allocation2 + $0x70] sm:$0xff] 0.0
          %289 = vst [vmem:[#allocation2 + $0x78] sm:$0xff] 0.0
          %290 = vst [vmem:[#allocation2 + $0x80] sm:$0xff] 0.0
          %291 = vst [vmem:[#allocation2 + $0x88] sm:$0xff] 0.0
          %292 = vst [vmem:[#allocation2 + $0x90] sm:$0xff] 0.0
          %293 = vst [vmem:[#allocation2 + $0x98] sm:$0xff] 0.0
          %294 = vst [vmem:[#allocation2 + $0xa0] sm:$0xff] 0.0
          %295 = vst [vmem:[#allocation2 + $0xa8] sm:$0xff] 0.0
          %296 = vst [vmem:[#allocation2 + $0xb0] sm:$0xff] 0.0
          %297 = vst [vmem:[#allocation2 + $0xb8] sm:$0xff] 0.0
          %298 = vst [vmem:[#allocation2 + $0xc0] sm:$0xff] 0.0
          %299 = vst [vmem:[#allocation2 + $0xc8] sm:$0xff] 0.0
          %300 = vst [vmem:[#allocation2 + $0xd0] sm:$0xff] 0.0
          %301 = vst [vmem:[#allocation2 + $0xd8] sm:$0xff] 0.0
          %302 = vst [vmem:[#allocation2 + $0xe0] sm:$0xff] 0.0
          %303 = vst [vmem:[#allocation2 + $0xe8] sm:$0xff] 0.0
          %304 = vst [vmem:[#allocation2 + $0xf0] sm:$0xff] 0.0
          %305 = vst [vmem:[#allocation2 + $0xf8] sm:$0xff] 0.0
        $region52: #{tpu_custom_call.1} parent=35 // pred_fallthru
          _
        %v306 = vld [vmem:[#allocation2] sm:$0xff]
        %v307 = vld [vmem:[#allocation2 + $0x8] sm:$0xff]
        %v308 = vld [vmem:[#allocation2 + $0x10] sm:$0xff]
        %v309 = vld [vmem:[#allocation2 + $0x18] sm:$0xff]
        %v310 = vld [vmem:[#allocation2 + $0x20] sm:$0xff]
        %v311 = vld [vmem:[#allocation2 + $0x28] sm:$0xff]
        %v312 = vld [vmem:[#allocation2 + $0x30] sm:$0xff]
        %v313 = vld [vmem:[#allocation2 + $0x38] sm:$0xff]
        %v314 = vld [vmem:[#allocation2 + $0x40] sm:$0xff]
        %v315 = vld [vmem:[#allocation2 + $0x48] sm:$0xff]
        %v316 = vld [vmem:[#allocation2 + $0x50] sm:$0xff]
        %v317 = vld [vmem:[#allocation2 + $0x58] sm:$0xff]
        %v318 = vld [vmem:[#allocation2 + $0x60] sm:$0xff]
        %v319 = vld [vmem:[#allocation2 + $0x68] sm:$0xff]
        %v320 = vld [vmem:[#allocation2 + $0x70] sm:$0xff]
        %v321 = vld [vmem:[#allocation2 + $0x78] sm:$0xff]
        %v322 = vld [vmem:[#allocation2 + $0x80] sm:$0xff]
        %v323 = vld [vmem:[#allocation2 + $0x88] sm:$0xff]
        %v324 = vld [vmem:[#allocation2 + $0x90] sm:$0xff]
        %v325 = vld [vmem:[#allocation2 + $0x98] sm:$0xff]
        %v326 = vld [vmem:[#allocation2 + $0xa0] sm:$0xff]
        %v327 = vld [vmem:[#allocation2 + $0xa8] sm:$0xff]
        %v328 = vld [vmem:[#allocation2 + $0xb0] sm:$0xff]
        %v329 = vld [vmem:[#allocation2 + $0xb8] sm:$0xff]
        %v330 = vld [vmem:[#allocation2 + $0xc0] sm:$0xff]
        %v331 = vld [vmem:[#allocation2 + $0xc8] sm:$0xff]
        %v332 = vld [vmem:[#allocation2 + $0xd0] sm:$0xff]
        %v333 = vld [vmem:[#allocation2 + $0xd8] sm:$0xff]
        %v334 = vld [vmem:[#allocation2 + $0xe0] sm:$0xff]
        %v335 = vld [vmem:[#allocation2 + $0xe8] sm:$0xff]
        %v336 = vld [vmem:[#allocation2 + $0xf0] sm:$0xff]
        %v337 = vld [vmem:[#allocation2 + $0xf8] sm:$0xff]
        %v338 = vld [vmem:[%s232] sm:$0xff]
        %v339 = vld [vmem:[%s232 + $0x10] sm:$0xff]
        %v340 = vld [vmem:[%s232 + $0x20] sm:$0xff]
        %v341 = vld [vmem:[%s232 + $0x30] sm:$0xff]
        %v342 = vld [vmem:[%s232 + $0x40] sm:$0xff]
        %v343 = vld [vmem:[%s232 + $0x50] sm:$0xff]
        %v344 = vld [vmem:[%s232 + $0x60] sm:$0xff]
        %v345 = vld [vmem:[%s232 + $0x70] sm:$0xff]
        %v346 = vld [vmem:[%s232 + $0x80] sm:$0xff]
        %v347 = vld [vmem:[%s232 + $0x90] sm:$0xff]
        %v348 = vld [vmem:[%s232 + $0xa0] sm:$0xff]
        %v349 = vld [vmem:[%s232 + $0xb0] sm:$0xff]
        %v350 = vld [vmem:[%s232 + $0xc0] sm:$0xff]
        %v351 = vld [vmem:[%s232 + $0xd0] sm:$0xff]
        %v352 = vld [vmem:[%s232 + $0xe0] sm:$0xff]
        %v353 = vld [vmem:[%s232 + $0xf0] sm:$0xff]
        %v354 = vld [vmem:[%s232 + $0x100] sm:$0xff]
        %v355 = vld [vmem:[%s232 + $0x110] sm:$0xff]
        %v356 = vld [vmem:[%s232 + $0x120] sm:$0xff]
        %v357 = vld [vmem:[%s232 + $0x130] sm:$0xff]
        %v358 = vld [vmem:[%s232 + $0x140] sm:$0xff]
        %v359 = vld [vmem:[%s232 + $0x150] sm:$0xff]
        %v360 = vld [vmem:[%s232 + $0x160] sm:$0xff]
        %v361 = vld [vmem:[%s232 + $0x170] sm:$0xff]
        %v362 = vld [vmem:[%s232 + $0x180] sm:$0xff]
        %v363 = vld [vmem:[%s232 + $0x190] sm:$0xff]
        %v364 = vld [vmem:[%s232 + $0x1a0] sm:$0xff]
        %v365 = vld [vmem:[%s232 + $0x1b0] sm:$0xff]
        %v366 = vld [vmem:[%s232 + $0x1c0] sm:$0xff]
        %v367 = vld [vmem:[%s232 + $0x1d0] sm:$0xff]
        %v368 = vld [vmem:[%s232 + $0x1e0] sm:$0xff]
        %v369 = vld [vmem:[%s232 + $0x1f0] sm:$0xff]
        %v370 = vadd.f32 %v306, %v338
        %v371 = vadd.f32 %v307, %v339
        %v372 = vadd.f32 %v308, %v340
        %v373 = vadd.f32 %v309, %v341
        %v374 = vadd.f32 %v310, %v342
        %v375 = vadd.f32 %v311, %v343
        %v376 = vadd.f32 %v312, %v344
        %v377 = vadd.f32 %v313, %v345
        %v378 = vadd.f32 %v314, %v346
        %v379 = vadd.f32 %v315, %v347
        %v380 = vadd.f32 %v316, %v348
        %v381 = vadd.f32 %v317, %v349
        %v382 = vadd.f32 %v318, %v350
        %v383 = vadd.f32 %v319, %v351
        %v384 = vadd.f32 %v320, %v352
        %v385 = vadd.f32 %v321, %v353
        %v386 = vadd.f32 %v322, %v354
        %v387 = vadd.f32 %v323, %v355
        %v388 = vadd.f32 %v324, %v356
        %v389 = vadd.f32 %v325, %v357
        %v390 = vadd.f32 %v326, %v358
        %v391 = vadd.f32 %v327, %v359
        %v392 = vadd.f32 %v328, %v360
        %v393 = vadd.f32 %v329, %v361
        %v394 = vadd.f32 %v330, %v362
        %v395 = vadd.f32 %v331, %v363
        %v396 = vadd.f32 %v332, %v364
        %v397 = vadd.f32 %v333, %v365
        %v398 = vadd.f32 %v334, %v366
        %v399 = vadd.f32 %v335, %v367
        %v400 = vadd.f32 %v336, %v368
        %v401 = vadd.f32 %v337, %v369
        %402 = vst [vmem:[#allocation2] sm:$0xff] %v370
        %403 = vst [vmem:[#allocation2 + $0x8] sm:$0xff] %v371
        %404 = vst [vmem:[#allocation2 + $0x10] sm:$0xff] %v372
        %405 = vst [vmem:[#allocation2 + $0x18] sm:$0xff] %v373
        %406 = vst [vmem:[#allocation2 + $0x20] sm:$0xff] %v374
        %407 = vst [vmem:[#allocation2 + $0x28] sm:$0xff] %v375
        %408 = vst [vmem:[#allocation2 + $0x30] sm:$0xff] %v376
        %409 = vst [vmem:[#allocation2 + $0x38] sm:$0xff] %v377
        %410 = vst [vmem:[#allocation2 + $0x40] sm:$0xff] %v378
        %411 = vst [vmem:[#allocation2 + $0x48] sm:$0xff] %v379
        %412 = vst [vmem:[#allocation2 + $0x50] sm:$0xff] %v380
        %413 = vst [vmem:[#allocation2 + $0x58] sm:$0xff] %v381
        %414 = vst [vmem:[#allocation2 + $0x60] sm:$0xff] %v382
        %415 = vst [vmem:[#allocation2 + $0x68] sm:$0xff] %v383
        %416 = vst [vmem:[#allocation2 + $0x70] sm:$0xff] %v384
        %417 = vst [vmem:[#allocation2 + $0x78] sm:$0xff] %v385
        %418 = vst [vmem:[#allocation2 + $0x80] sm:$0xff] %v386
        %419 = vst [vmem:[#allocation2 + $0x88] sm:$0xff] %v387
        %420 = vst [vmem:[#allocation2 + $0x90] sm:$0xff] %v388
        %421 = vst [vmem:[#allocation2 + $0x98] sm:$0xff] %v389
        %422 = vst [vmem:[#allocation2 + $0xa0] sm:$0xff] %v390
        %423 = vst [vmem:[#allocation2 + $0xa8] sm:$0xff] %v391
        %424 = vst [vmem:[#allocation2 + $0xb0] sm:$0xff] %v392
        %425 = vst [vmem:[#allocation2 + $0xb8] sm:$0xff] %v393
        %426 = vst [vmem:[#allocation2 + $0xc0] sm:$0xff] %v394
        %427 = vst [vmem:[#allocation2 + $0xc8] sm:$0xff] %v395
        %428 = vst [vmem:[#allocation2 + $0xd0] sm:$0xff] %v396
        %429 = vst [vmem:[#allocation2 + $0xd8] sm:$0xff] %v397
        %430 = vst [vmem:[#allocation2 + $0xe0] sm:$0xff] %v398
        %431 = vst [vmem:[#allocation2 + $0xe8] sm:$0xff] %v399
        %432 = vst [vmem:[#allocation2 + $0xf0] sm:$0xff] %v400
        %433 = vst [vmem:[#allocation2 + $0xf8] sm:$0xff] %v401
        %v434 = vld [vmem:[#allocation2] sm:$0xff]
        %v435 = vld [vmem:[#allocation2 + $0x8] sm:$0xff]
        %v436 = vld [vmem:[#allocation2 + $0x10] sm:$0xff]
        %v437 = vld [vmem:[#allocation2 + $0x18] sm:$0xff]
        %v438 = vld [vmem:[#allocation2 + $0x20] sm:$0xff]
        %v439 = vld [vmem:[#allocation2 + $0x28] sm:$0xff]
        %v440 = vld [vmem:[#allocation2 + $0x30] sm:$0xff]
        %v441 = vld [vmem:[#allocation2 + $0x38] sm:$0xff]
        %v442 = vld [vmem:[#allocation2 + $0x40] sm:$0xff]
        %v443 = vld [vmem:[#allocation2 + $0x48] sm:$0xff]
        %v444 = vld [vmem:[#allocation2 + $0x50] sm:$0xff]
        %v445 = vld [vmem:[#allocation2 + $0x58] sm:$0xff]
        %v446 = vld [vmem:[#allocation2 + $0x60] sm:$0xff]
        %v447 = vld [vmem:[#allocation2 + $0x68] sm:$0xff]
        %v448 = vld [vmem:[#allocation2 + $0x70] sm:$0xff]
        %v449 = vld [vmem:[#allocation2 + $0x78] sm:$0xff]
        %v450 = vld [vmem:[#allocation2 + $0x80] sm:$0xff]
        %v451 = vld [vmem:[#allocation2 + $0x88] sm:$0xff]
        %v452 = vld [vmem:[#allocation2 + $0x90] sm:$0xff]
        %v453 = vld [vmem:[#allocation2 + $0x98] sm:$0xff]
        %v454 = vld [vmem:[#allocation2 + $0xa0] sm:$0xff]
        %v455 = vld [vmem:[#allocation2 + $0xa8] sm:$0xff]
        %v456 = vld [vmem:[#allocation2 + $0xb0] sm:$0xff]
        %v457 = vld [vmem:[#allocation2 + $0xb8] sm:$0xff]
        %v458 = vld [vmem:[#allocation2 + $0xc0] sm:$0xff]
        %v459 = vld [vmem:[#allocation2 + $0xc8] sm:$0xff]
        %v460 = vld [vmem:[#allocation2 + $0xd0] sm:$0xff]
        %v461 = vld [vmem:[#allocation2 + $0xd8] sm:$0xff]
        %v462 = vld [vmem:[#allocation2 + $0xe0] sm:$0xff]
        %v463 = vld [vmem:[#allocation2 + $0xe8] sm:$0xff]
        %v464 = vld [vmem:[#allocation2 + $0xf0] sm:$0xff]
        %v465 = vld [vmem:[#allocation2 + $0xf8] sm:$0xff]
        %v466 = vld [vmem:[%s232 + $0x8] sm:$0xff]
        %v467 = vld [vmem:[%s232 + $0x18] sm:$0xff]
        %v468 = vld [vmem:[%s232 + $0x28] sm:$0xff]
        %v469 = vld [vmem:[%s232 + $0x38] sm:$0xff]
        %v470 = vld [vmem:[%s232 + $0x48] sm:$0xff]
        %v471 = vld [vmem:[%s232 + $0x58] sm:$0xff]
        %v472 = vld [vmem:[%s232 + $0x68] sm:$0xff]
        %v473 = vld [vmem:[%s232 + $0x78] sm:$0xff]
        %v474 = vld [vmem:[%s232 + $0x88] sm:$0xff]
        %v475 = vld [vmem:[%s232 + $0x98] sm:$0xff]
        %v476 = vld [vmem:[%s232 + $0xa8] sm:$0xff]
        %v477 = vld [vmem:[%s232 + $0xb8] sm:$0xff]
        %v478 = vld [vmem:[%s232 + $0xc8] sm:$0xff]
        %v479 = vld [vmem:[%s232 + $0xd8] sm:$0xff]
        %v480 = vld [vmem:[%s232 + $0xe8] sm:$0xff]
        %v481 = vld [vmem:[%s232 + $0xf8] sm:$0xff]
        %v482 = vld [vmem:[%s232 + $0x108] sm:$0xff]
        %v483 = vld [vmem:[%s232 + $0x118] sm:$0xff]
        %v484 = vld [vmem:[%s232 + $0x128] sm:$0xff]
        %v485 = vld [vmem:[%s232 + $0x138] sm:$0xff]
        %v486 = vld [vmem:[%s232 + $0x148] sm:$0xff]
        %v487 = vld [vmem:[%s232 + $0x158] sm:$0xff]
        %v488 = vld [vmem:[%s232 + $0x168] sm:$0xff]
        %v489 = vld [vmem:[%s232 + $0x178] sm:$0xff]
        %v490 = vld [vmem:[%s232 + $0x188] sm:$0xff]
        %v491 = vld [vmem:[%s232 + $0x198] sm:$0xff]
        %v492 = vld [vmem:[%s232 + $0x1a8] sm:$0xff]
        %v493 = vld [vmem:[%s232 + $0x1b8] sm:$0xff]
        %v494 = vld [vmem:[%s232 + $0x1c8] sm:$0xff]
        %v495 = vld [vmem:[%s232 + $0x1d8] sm:$0xff]
        %v496 = vld [vmem:[%s232 + $0x1e8] sm:$0xff]
        %v497 = vld [vmem:[%s232 + $0x1f8] sm:$0xff]
        %v498 = vadd.f32 %v434, %v466
        %v499 = vadd.f32 %v435, %v467
        %v500 = vadd.f32 %v436, %v468
        %v501 = vadd.f32 %v437, %v469
        %v502 = vadd.f32 %v438, %v470
        %v503 = vadd.f32 %v439, %v471
        %v504 = vadd.f32 %v440, %v472
        %v505 = vadd.f32 %v441, %v473
        %v506 = vadd.f32 %v442, %v474
        %v507 = vadd.f32 %v443, %v475
        %v508 = vadd.f32 %v444, %v476
        %v509 = vadd.f32 %v445, %v477
        %v510 = vadd.f32 %v446, %v478
        %v511 = vadd.f32 %v447, %v479
        %v512 = vadd.f32 %v448, %v480
        %v513 = vadd.f32 %v449, %v481
        %v514 = vadd.f32 %v450, %v482
        %v515 = vadd.f32 %v451, %v483
        %v516 = vadd.f32 %v452, %v484
        %v517 = vadd.f32 %v453, %v485
        %v518 = vadd.f32 %v454, %v486
        %v519 = vadd.f32 %v455, %v487
        %v520 = vadd.f32 %v456, %v488
        %v521 = vadd.f32 %v457, %v489
        %v522 = vadd.f32 %v458, %v490
        %v523 = vadd.f32 %v459, %v491
        %v524 = vadd.f32 %v460, %v492
        %v525 = vadd.f32 %v461, %v493
        %v526 = vadd.f32 %v462, %v494
        %v527 = vadd.f32 %v463, %v495
        %v528 = vadd.f32 %v464, %v496
        %v529 = vadd.f32 %v465, %v497
        %530 = vst [vmem:[#allocation2] sm:$0xff] %v498
        %531 = vst [vmem:[#allocation2 + $0x8] sm:$0xff] %v499
        %532 = vst [vmem:[#allocation2 + $0x10] sm:$0xff] %v500
        %533 = vst [vmem:[#allocation2 + $0x18] sm:$0xff] %v501
        %534 = vst [vmem:[#allocation2 + $0x20] sm:$0xff] %v502
        %535 = vst [vmem:[#allocation2 + $0x28] sm:$0xff] %v503
        %536 = vst [vmem:[#allocation2 + $0x30] sm:$0xff] %v504
        %537 = vst [vmem:[#allocation2 + $0x38] sm:$0xff] %v505
        %538 = vst [vmem:[#allocation2 + $0x40] sm:$0xff] %v506
        %539 = vst [vmem:[#allocation2 + $0x48] sm:$0xff] %v507
        %540 = vst [vmem:[#allocation2 + $0x50] sm:$0xff] %v508
        %541 = vst [vmem:[#allocation2 + $0x58] sm:$0xff] %v509
        %542 = vst [vmem:[#allocation2 + $0x60] sm:$0xff] %v510
        %543 = vst [vmem:[#allocation2 + $0x68] sm:$0xff] %v511
        %544 = vst [vmem:[#allocation2 + $0x70] sm:$0xff] %v512
        %545 = vst [vmem:[#allocation2 + $0x78] sm:$0xff] %v513
        %546 = vst [vmem:[#allocation2 + $0x80] sm:$0xff] %v514
        %547 = vst [vmem:[#allocation2 + $0x88] sm:$0xff] %v515
        %548 = vst [vmem:[#allocation2 + $0x90] sm:$0xff] %v516
        %549 = vst [vmem:[#allocation2 + $0x98] sm:$0xff] %v517
        %550 = vst [vmem:[#allocation2 + $0xa0] sm:$0xff] %v518
        %551 = vst [vmem:[#allocation2 + $0xa8] sm:$0xff] %v519
        %552 = vst [vmem:[#allocation2 + $0xb0] sm:$0xff] %v520
        %553 = vst [vmem:[#allocation2 + $0xb8] sm:$0xff] %v521
        %554 = vst [vmem:[#allocation2 + $0xc0] sm:$0xff] %v522
        %555 = vst [vmem:[#allocation2 + $0xc8] sm:$0xff] %v523
        %556 = vst [vmem:[#allocation2 + $0xd0] sm:$0xff] %v524
        %557 = vst [vmem:[#allocation2 + $0xd8] sm:$0xff] %v525
        %558 = vst [vmem:[#allocation2 + $0xe0] sm:$0xff] %v526
        %559 = vst [vmem:[#allocation2 + $0xe8] sm:$0xff] %v527
        %560 = vst [vmem:[#allocation2 + $0xf0] sm:$0xff] %v528
        %561 = vst [vmem:[#allocation2 + $0xf8] sm:$0xff] %v529
        // Predicated region
        $region53: #{tpu_custom_call.1} parent=35 // pred_check
          %p562 = pneg %p270
        $region54: #{tpu_custom_call.1} parent=35 // pred_check_branch
          %564 = sbr.rel (%p562) target = $region56
        $region55: #{tpu_custom_call.1} parent=35 // pred_region
          %v565 = vld [vmem:[#allocation2] sm:$0xff]
          %v566 = vld [vmem:[#allocation2 + $0x8] sm:$0xff]
          %v567 = vld [vmem:[#allocation2 + $0x10] sm:$0xff]
          %v568 = vld [vmem:[#allocation2 + $0x18] sm:$0xff]
          %v569 = vld [vmem:[#allocation2 + $0x20] sm:$0xff]
          %v570 = vld [vmem:[#allocation2 + $0x28] sm:$0xff]
          %v571 = vld [vmem:[#allocation2 + $0x30] sm:$0xff]
          %v572 = vld [vmem:[#allocation2 + $0x38] sm:$0xff]
          %v573 = vld [vmem:[#allocation2 + $0x40] sm:$0xff]
          %v574 = vld [vmem:[#allocation2 + $0x48] sm:$0xff]
          %v575 = vld [vmem:[#allocation2 + $0x50] sm:$0xff]
          %v576 = vld [vmem:[#allocation2 + $0x58] sm:$0xff]
          %v577 = vld [vmem:[#allocation2 + $0x60] sm:$0xff]
          %v578 = vld [vmem:[#allocation2 + $0x68] sm:$0xff]
          %v579 = vld [vmem:[#allocation2 + $0x70] sm:$0xff]
          %v580 = vld [vmem:[#allocation2 + $0x78] sm:$0xff]
          %v581 = vld [vmem:[#allocation2 + $0x80] sm:$0xff]
          %v582 = vld [vmem:[#allocation2 + $0x88] sm:$0xff]
          %v583 = vld [vmem:[#allocation2 + $0x90] sm:$0xff]
          %v584 = vld [vmem:[#allocation2 + $0x98] sm:$0xff]
          %v585 = vld [vmem:[#allocation2 + $0xa0] sm:$0xff]
          %v586 = vld [vmem:[#allocation2 + $0xa8] sm:$0xff]
          %v587 = vld [vmem:[#allocation2 + $0xb0] sm:$0xff]
          %v588 = vld [vmem:[#allocation2 + $0xb8] sm:$0xff]
          %v589 = vld [vmem:[#allocation2 + $0xc0] sm:$0xff]
          %v590 = vld [vmem:[#allocation2 + $0xc8] sm:$0xff]
          %v591 = vld [vmem:[#allocation2 + $0xd0] sm:$0xff]
          %v592 = vld [vmem:[#allocation2 + $0xd8] sm:$0xff]
          %v593 = vld [vmem:[#allocation2 + $0xe0] sm:$0xff]
          %v594 = vld [vmem:[#allocation2 + $0xe8] sm:$0xff]
          %v595 = vld [vmem:[#allocation2 + $0xf0] sm:$0xff]
          %v596 = vld [vmem:[#allocation2 + $0xf8] sm:$0xff]
          %597 = vadd.xlane.f32.xlu0 %v565
          %v598 = vpop.xlane.xlu0 %597
          %599 = vadd.xlane.f32.xlu0 %v566
          %v600 = vpop.xlane.xlu0 %599
          %601 = vadd.xlane.f32.xlu0 %v567
          %v602 = vpop.xlane.xlu0 %601
          %603 = vadd.xlane.f32.xlu0 %v568
          %v604 = vpop.xlane.xlu0 %603
          %605 = vadd.xlane.f32.xlu0 %v569
          %v606 = vpop.xlane.xlu0 %605
          %607 = vadd.xlane.f32.xlu0 %v570
          %v608 = vpop.xlane.xlu0 %607
          %609 = vadd.xlane.f32.xlu0 %v571
          %v610 = vpop.xlane.xlu0 %609
          %611 = vadd.xlane.f32.xlu0 %v572
          %v612 = vpop.xlane.xlu0 %611
          %613 = vadd.xlane.f32.xlu0 %v573
          %v614 = vpop.xlane.xlu0 %613
          %615 = vadd.xlane.f32.xlu0 %v574
          %v616 = vpop.xlane.xlu0 %615
          %617 = vadd.xlane.f32.xlu0 %v575
          %v618 = vpop.xlane.xlu0 %617
          %619 = vadd.xlane.f32.xlu0 %v576
          %v620 = vpop.xlane.xlu0 %619
          %621 = vadd.xlane.f32.xlu0 %v577
          %v622 = vpop.xlane.xlu0 %621
          %623 = vadd.xlane.f32.xlu0 %v578
          %v624 = vpop.xlane.xlu0 %623
          %625 = vadd.xlane.f32.xlu0 %v579
          %v626 = vpop.xlane.xlu0 %625
          %627 = vadd.xlane.f32.xlu0 %v580
          %v628 = vpop.xlane.xlu0 %627
          %629 = vadd.xlane.f32.xlu0 %v581
          %v630 = vpop.xlane.xlu0 %629
          %631 = vadd.xlane.f32.xlu0 %v582
          %v632 = vpop.xlane.xlu0 %631
          %633 = vadd.xlane.f32.xlu0 %v583
          %v634 = vpop.xlane.xlu0 %633
          %635 = vadd.xlane.f32.xlu0 %v584
          %v636 = vpop.xlane.xlu0 %635
          %637 = vadd.xlane.f32.xlu0 %v585
          %v638 = vpop.xlane.xlu0 %637
          %639 = vadd.xlane.f32.xlu0 %v586
          %v640 = vpop.xlane.xlu0 %639
          %641 = vadd.xlane.f32.xlu0 %v587
          %v642 = vpop.xlane.xlu0 %641
          %643 = vadd.xlane.f32.xlu0 %v588
          %v644 = vpop.xlane.xlu0 %643
          %645 = vadd.xlane.f32.xlu0 %v589
          %v646 = vpop.xlane.xlu0 %645
          %647 = vadd.xlane.f32.xlu0 %v590
          %v648 = vpop.xlane.xlu0 %647
          %649 = vadd.xlane.f32.xlu0 %v591
          %v650 = vpop.xlane.xlu0 %649
          %651 = vadd.xlane.f32.xlu0 %v592
          %v652 = vpop.xlane.xlu0 %651
          %653 = vadd.xlane.f32.xlu0 %v593
          %v654 = vpop.xlane.xlu0 %653
          %655 = vadd.xlane.f32.xlu0 %v594
          %v656 = vpop.xlane.xlu0 %655
          %657 = vadd.xlane.f32.xlu0 %v595
          %v658 = vpop.xlane.xlu0 %657
          %659 = vadd.xlane.f32.xlu0 %v596
          %v660 = vpop.xlane.xlu0 %659
          %v661 = vmul.f32 %v598, 0.00390625
          %v662 = vmul.f32 %v600, 0.00390625
          %v663 = vmul.f32 %v602, 0.00390625
          %v664 = vmul.f32 %v604, 0.00390625
          %v665 = vmul.f32 %v606, 0.00390625
          %v666 = vmul.f32 %v608, 0.00390625
          %v667 = vmul.f32 %v610, 0.00390625
          %v668 = vmul.f32 %v612, 0.00390625
          %v669 = vmul.f32 %v614, 0.00390625
          %v670 = vmul.f32 %v616, 0.00390625
          %v671 = vmul.f32 %v618, 0.00390625
          %v672 = vmul.f32 %v620, 0.00390625
          %v673 = vmul.f32 %v622, 0.00390625
          %v674 = vmul.f32 %v624, 0.00390625
          %v675 = vmul.f32 %v626, 0.00390625
          %v676 = vmul.f32 %v628, 0.00390625
          %v677 = vmul.f32 %v630, 0.00390625
          %v678 = vmul.f32 %v632, 0.00390625
          %v679 = vmul.f32 %v634, 0.00390625
          %v680 = vmul.f32 %v636, 0.00390625
          %v681 = vmul.f32 %v638, 0.00390625
          %v682 = vmul.f32 %v640, 0.00390625
          %v683 = vmul.f32 %v642, 0.00390625
          %v684 = vmul.f32 %v644, 0.00390625
          %v685 = vmul.f32 %v646, 0.00390625
          %v686 = vmul.f32 %v648, 0.00390625
          %v687 = vmul.f32 %v650, 0.00390625
          %v688 = vmul.f32 %v652, 0.00390625
          %v689 = vmul.f32 %v654, 0.00390625
          %v690 = vmul.f32 %v656, 0.00390625
          %v691 = vmul.f32 %v658, 0.00390625
          %v692 = vmul.f32 %v660, 0.00390625
          %v693 = vld [vmem:[#allocation6] sm:$0xff]
          %v694 = vld [vmem:[#allocation6 + $0x8] sm:$0xff]
          %v695 = vld [vmem:[#allocation6 + $0x10] sm:$0xff]
          %v696 = vld [vmem:[#allocation6 + $0x18] sm:$0xff]
          %v697 = vld [vmem:[%s2] sm:$0x1]
          %v699 = vperm.slane %v697, 0
          %v733 = vlaneseq
          %v734 = vand.u32 %v733, 127
          %v735 = vperm.slane %v661, %v734
          %v736 = vadd.s32 %v734, 4294967288
          %v737 = vperm.slane %v662, %v736
          %vm738 = vcmask 130112
          %v739 = vsel %vm738, %v737, %v735
          %v740 = vadd.s32 %v734, 4294967280
          %v741 = vperm.slane %v663, %v740
          %vm742 = vcmask 195712
          %v743 = vsel %vm742, %v741, %v739
          %v744 = vadd.s32 %v734, 4294967272
          %v745 = vperm.slane %v664, %v744
          %vm746 = vcmask 261312
          %v747 = vsel %vm746, %v745, %v743
          %v748 = vperm.slane %v665, %v734
          %v749 = vperm.slane %v666, %v736
          %v750 = vsel %vm738, %v749, %v748
          %v751 = vperm.slane %v667, %v740
          %v752 = vsel %vm742, %v751, %v750
          %v753 = vperm.slane %v668, %v744
          %v754 = vsel %vm746, %v753, %v752
          %v755 = vperm.slane %v669, %v734
          %v756 = vperm.slane %v670, %v736
          %v757 = vsel %vm738, %v756, %v755
          %v758 = vperm.slane %v671, %v740
          %v759 = vsel %vm742, %v758, %v757
          %v760 = vperm.slane %v672, %v744
          %v761 = vsel %vm746, %v760, %v759
          %v762 = vperm.slane %v673, %v734
          %v763 = vperm.slane %v674, %v736
          %v764 = vsel %vm738, %v763, %v762
          %v765 = vperm.slane %v675, %v740
          %v766 = vsel %vm742, %v765, %v764
          %v767 = vperm.slane %v676, %v744
          %v768 = vsel %vm746, %v767, %v766
          %v769 = vperm.slane %v677, %v734
          %v770 = vperm.slane %v678, %v736
          %v771 = vsel %vm738, %v770, %v769
          %v772 = vperm.slane %v679, %v740
          %v773 = vsel %vm742, %v772, %v771
          %v774 = vperm.slane %v680, %v744
          %v775 = vsel %vm746, %v774, %v773
          %v776 = vperm.slane %v681, %v734
          %v777 = vperm.slane %v682, %v736
          %v778 = vsel %vm738, %v777, %v776
          %v779 = vperm.slane %v683, %v740
          %v780 = vsel %vm742, %v779, %v778
          %v781 = vperm.slane %v684, %v744
          %v782 = vsel %vm746, %v781, %v780
          %v783 = vperm.slane %v685, %v734
          %v784 = vperm.slane %v686, %v736
          %v785 = vsel %vm738, %v784, %v783
          %v786 = vperm.slane %v687, %v740
          %v787 = vsel %vm742, %v786, %v785
          %v788 = vperm.slane %v688, %v744
          %v789 = vsel %vm746, %v788, %v787
          %v790 = vperm.slane %v689, %v734
          %v791 = vperm.slane %v690, %v736
          %v792 = vsel %vm738, %v791, %v790
          %v793 = vperm.slane %v691, %v740
          %v794 = vsel %vm742, %v793, %v792
          %v795 = vperm.slane %v692, %v744
          %v796 = vsel %vm746, %v795, %v794
          %vm797 = vcmask 1041409
          %v798 = vsel %vm797, %v754, %v747
          %vm799 = vcmask 1042434
          %v800 = vsel %vm799, %v761, %v798
          %vm801 = vcmask 1043459
          %v802 = vsel %vm801, %v768, %v800
          %vm803 = vcmask 1044484
          %v804 = vsel %vm803, %v775, %v802
          %vm805 = vcmask 1045509
          %v806 = vsel %vm805, %v782, %v804
          %vm807 = vcmask 1046534
          %v808 = vsel %vm807, %v789, %v806
          %vm809 = vcmask 1047559
          %v810 = vsel %vm809, %v796, %v808
          %vm811 = vcmask 261120
          %v812 = vsel %vm811, %v810, 0
          %814 = vmatpush.msra.mxu0 0.0
          %815 = vmatpush.msra.mxu0 0.0
          %816 = vmatpush.msra.mxu0 0.0
          %817 = vmatpush.msra.mxu0 0.0
          %818 = vmatpush.msra.mxu0 0.0
          %819 = vmatpush.msra.mxu0 0.0
          %820 = vmatpush.msra.mxu0 0.0
          %821 = vmatpush.msra.mxu0 0.0
          %822 = vmatpush.msra.mxu0 0.0
          %823 = vmatpush.msra.mxu0 0.0
          %824 = vmatpush.msra.mxu0 0.0
          %825 = vmatpush.msra.mxu0 0.0
          %826 = vmatpush.msra.mxu0 %v696
          %827 = vmatpush.msra.mxu0 %v695
          %828 = vmatpush.msra.mxu0 %v694
          %829 = vmatpush.msra.mxu0 %v693
          %830 = vmatmul.f32.gmra.mxu0 %v812
          %v831 = vpop.f32.mrf.mxu0
          %v832 = vadd.f32 %v699, %v831
          %833 = vdwg.mxu0
          %v834 = vmul.f32 %v832, %v832
          %835 = vadd.xlane.f32.xlu0 %v834
          %v836 = vpop.xlane.xlu0 %835
          %v837 = vmax.f32 %v836, 1e-24
          %v838 = vrsqrt.pop %v837
          %v839 = vmul.f32 %v838, %v837
          %v840 = vmul.f32 %v839, %v838
          %v841 = vmul.f32 0.5, %v840
          %v842 = vsub.f32 1.5, %v841
          %v843 = vmul.f32 %v838, %v842
          %vm844 = vweird.f32 %v837
          %vm845 = vweird.f32 %v838
          %vm846 = vmor %vm844, %vm845
          %v847 = vsel %vm846, %v838, %v843
          %v848 = vmul.f32 %v832, %v847
          %v849 = vld [vmem:[#allocation8] sm:$0xff]
          %v850 = vld [vmem:[#allocation8 + $0x8] sm:$0xff]
          %v851 = vld [vmem:[#allocation8 + $0x10] sm:$0xff]
          %v852 = vld [vmem:[#allocation8 + $0x18] sm:$0xff]
          %v853 = vld [vmem:[#allocation8 + $0x20] sm:$0xff]
          %v854 = vld [vmem:[#allocation8 + $0x28] sm:$0xff]
          %v855 = vld [vmem:[#allocation8 + $0x30] sm:$0xff]
          %v856 = vld [vmem:[#allocation8 + $0x38] sm:$0xff]
          %v857 = vld [vmem:[#allocation8 + $0x40] sm:$0xff]
          %v858 = vld [vmem:[#allocation8 + $0x48] sm:$0xff]
          %v859 = vld [vmem:[#allocation8 + $0x50] sm:$0xff]
          %v860 = vld [vmem:[#allocation8 + $0x58] sm:$0xff]
          %v861 = vld [vmem:[#allocation8 + $0x60] sm:$0xff]
          %v862 = vld [vmem:[#allocation8 + $0x68] sm:$0xff]
          %v863 = vld [vmem:[#allocation8 + $0x70] sm:$0xff]
          %v864 = vld [vmem:[#allocation8 + $0x78] sm:$0xff]
          %v865 = vld [vmem:[#allocation8 + $0x80] sm:$0xff]
          %v866 = vld [vmem:[#allocation8 + $0x88] sm:$0xff]
          %v867 = vld [vmem:[#allocation8 + $0x90] sm:$0xff]
          %v868 = vld [vmem:[#allocation8 + $0x98] sm:$0xff]
          %v869 = vld [vmem:[#allocation8 + $0xa0] sm:$0xff]
          %v870 = vld [vmem:[#allocation8 + $0xa8] sm:$0xff]
          %v871 = vld [vmem:[#allocation8 + $0xb0] sm:$0xff]
          %v872 = vld [vmem:[#allocation8 + $0xb8] sm:$0xff]
          %v873 = vld [vmem:[#allocation8 + $0xc0] sm:$0xff]
          %v874 = vld [vmem:[#allocation8 + $0xc8] sm:$0xff]
          %v875 = vld [vmem:[#allocation8 + $0xd0] sm:$0xff]
          %v876 = vld [vmem:[#allocation8 + $0xd8] sm:$0xff]
          %v877 = vld [vmem:[#allocation8 + $0xe0] sm:$0xff]
          %v878 = vld [vmem:[#allocation8 + $0xe8] sm:$0xff]
          %v879 = vld [vmem:[#allocation8 + $0xf0] sm:$0xff]
          %v880 = vld [vmem:[#allocation8 + $0xf8] sm:$0xff]
          %881 = vmatpush.msra.mxu0 %v879
          %882 = vmatpush.msra.mxu0 %v877
          %883 = vmatpush.msra.mxu0 %v875
          %884 = vmatpush.msra.mxu0 %v873
          %885 = vmatpush.msra.mxu0 %v871
          %886 = vmatpush.msra.mxu0 %v869
          %887 = vmatpush.msra.mxu0 %v867
          %888 = vmatpush.msra.mxu0 %v865
          %889 = vmatpush.msra.mxu0 %v863
          %890 = vmatpush.msra.mxu0 %v861
          %891 = vmatpush.msra.mxu0 %v859
          %892 = vmatpush.msra.mxu0 %v857
          %893 = vmatpush.msra.mxu0 %v855
          %894 = vmatpush.msra.mxu0 %v853
          %895 = vmatpush.msra.mxu0 %v851
          %896 = vmatpush.msra.mxu0 %v849
          %897 = vmatmul.f32.gmra.mxu0 %v848
          %v898 = vpop.f32.mrf.mxu0
          %v899 = vadd.f32 0.0, %v898
          %900 = vdwg.mxu0
          %901 = vmatpush.msra.mxu0 %v880
          %902 = vmatpush.msra.mxu0 %v878
          %903 = vmatpush.msra.mxu0 %v876
          %904 = vmatpush.msra.mxu0 %v874
          %905 = vmatpush.msra.mxu0 %v872
          %906 = vmatpush.msra.mxu0 %v870
          %907 = vmatpush.msra.mxu0 %v868
          %908 = vmatpush.msra.mxu0 %v866
          %909 = vmatpush.msra.mxu0 %v864
          %910 = vmatpush.msra.mxu0 %v862
          %911 = vmatpush.msra.mxu0 %v860
          %912 = vmatpush.msra.mxu0 %v858
          %913 = vmatpush.msra.mxu0 %v856
          %914 = vmatpush.msra.mxu0 %v854
          %915 = vmatpush.msra.mxu0 %v852
          %916 = vmatpush.msra.mxu0 %v850
          %917 = vmatmul.f32.gmra.mxu0 %v848
          %v918 = vpop.f32.mrf.mxu0
          %v919 = vadd.f32 0.0, %v918
          %920 = vdwg.mxu0
          %v921 = vmul.f32 %v899, 20.0
          %v922 = vmul.f32 %v919, 20.0
          %923 = vst [vmem:[%s267] sm:$0xff] %v921
          %924 = vst [vmem:[%s267 + $0x8] sm:$0xff] %v922
        $region56: #{tpu_custom_call.1} parent=35 // pred_fallthru
          _
        %s925 = sand.u32 %s133, 1
        %s926 = scalar_lea.sflag [#allocation5], %s925
        %s927 = sand.u32 %s133, 1
        %s928 = smul.addr %s927, 16
        %s929 = scalar_lea.vmem [#allocation9], %s928
        // Predicated region
        $region57: #{tpu_custom_call.1} parent=35 // pred_check
          %p930 = pneg %p143
        $region58: #{tpu_custom_call.1} parent=35 // pred_check_branch
          %932 = sbr.rel (%p930) target = $region60
        $region59: #{tpu_custom_call.1} parent=35 // pred_region
          %934 = vsyncadd %s926, 0
          %s935 = smul.addr %s26, 2
          %s936 = smul.addr %s935, 8
          %s937 = scalar_lea.hbm %s4, %s936
          %s939 = sshll.u32 %s929, 4
          %s940 = int_to_ptr.vmem [resolvable:$true] %s939
          %s941 = sshll.u32 %s937, 4
          %s942 = int_to_ptr.hbm [resolvable:$true] %s941
          %944 = dma.vmem_to_hbm [thread:$0]  %s940, 256, %s942, %s926
        $region60: #{tpu_custom_call.1} parent=35 // pred_fallthru
          _
      $region36: #{tpu_custom_call.1} parent=5 // pred_fallthru
        _
      %p945 = scmp.le.s32.totalorder 2, %s17
      // Predicated region
      $region61: #{tpu_custom_call.1} parent=5 // pred_check
        %p946 = pneg %p945
      $region62: #{tpu_custom_call.1} parent=5 // pred_check_branch
        %948 = sbr.rel (%p946) target = $region64
      $region63: #{tpu_custom_call.1} parent=5 // pred_region
        %s949 = ssub.s32 %s17, 2
        // Predicated region
        $region65: #{tpu_custom_call.1} parent=63 // pred_check
          %p950 = pneg %p149
        $region66: #{tpu_custom_call.1} parent=63 // pred_check_branch
          %952 = sbr.rel (%p950) target = $region68
        $region67: #{tpu_custom_call.1} parent=63 // pred_region
          %s953 = sand.u32 %s134, 1
          %s954 = scalar_lea.sflag [#allocation5], %s953
          %s955 = sand.u32 %s134, 1
          %s956 = smul.addr %s955, 16
          %s957 = scalar_lea.vmem [#allocation9], %s956
          %959 = dma.done %s954, 256
        $region68: #{tpu_custom_call.1} parent=63 // pred_fallthru
          _
      $region64: #{tpu_custom_call.1} parent=5 // pred_fallthru
        _
    $region6: #{tpu_custom_call.1} parent=1 // loop_footer
      %s21 = sadd.s32 1, %s17
    $region7: #{tpu_custom_call.1} parent=1 // loop_footer_branch
      %16 = sbr.rel target = $region3
    $region8: #{tpu_custom_call.1} parent=1 // loop_exit
      _
    %960 = vsyncpa [#allocation4], 1
    %s961 = scalar_lea.sflag [#allocation4], 1
    %962 = vsyncpa %s961, 1
    %963 = vsyncpa [#allocation7], 1
    %964 = vsyncpa [#allocation5], 1
    %s965 = scalar_lea.sflag [#allocation5], 1
    %966 = vsyncpa %s965, 1

</llo_original>
